<compile_context>
chip_gen: v5e
topology: v5e:2x2
jax: 0.10.0
libtpu: 0.0.40
codegen_flags: <defaults>
</compile_context>

<pallas_src>
import jax
import jax.numpy as jnp
from jax.experimental import pallas as pl
from jax.experimental.pallas import tpu as pltpu


def _disc_kernel(x_ref, w1_ref, b1_ref, w2_ref, b2_ref, o_ref):
    j = pl.program_id(0)

    # Output block has a constant index_map -> resident in VMEM across the
    # (reduction) hidden axis.  Initialize with the fc2 bias on the first step.
    @pl.when(j == 0)
    def _():
        o_ref[...] = jnp.broadcast_to(b2_ref[...], o_ref.shape).astype(o_ref.dtype)

    # fc1 partial: [B, Din] @ [Din, TH] -> [B, TH] on the MXU, f32 accumulate.
    h = jnp.dot(x_ref[...], w1_ref[...], preferred_element_type=jnp.float32)
    h = h + b1_ref[...]                      # broadcast [1, TH]
    h = jnp.maximum(h, 0.2 * h)              # LeakyReLU(0.2) — one VALU max

    # fc2 partial on the VPU: elementwise multiply by the w2 row ([1, TH])
    # then a cross-lane reduce (XLU).  With the default single grid step this
    # writes the lane-sparse [B, 1] output exactly once.
    o_ref[...] += jnp.sum(h * w2_ref[...], axis=-1, keepdims=True)


def discriminator_forward(x, w1, b1, w2_row, b2, *, tile_h=None):
    """x: [B, Din]; w1: [Din, H]; b1: [H]; w2_row: [1, H]; b2: [1] -> [B, 1].

    Default tile_h = H collapses the grid to a single step (recommended:
    the whole problem fits in VMEM on v5e/v6e/v7x at these sizes).
    """
    B, Din = x.shape
    H = w1.shape[1]
    if tile_h is None:
        tile_h = H
    assert H % tile_h == 0 and tile_h % 128 == 0

    b1_2d = b1.reshape(1, H)
    b2_2d = b2.reshape(1, 1)

    grid = (H // tile_h,)
    return pl.pallas_call(
        _disc_kernel,
        out_shape=jax.ShapeDtypeStruct((B, 1), jnp.float32),
        grid_spec=pltpu.PrefetchScalarGridSpec(
            num_scalar_prefetch=0,
            grid=grid,
            in_specs=[
                pl.BlockSpec((B, Din), lambda j: (0, 0)),        # x (full, resident)
                pl.BlockSpec((Din, tile_h), lambda j: (0, j)),   # W1 tile
                pl.BlockSpec((1, tile_h), lambda j: (0, j)),     # b1 tile
                pl.BlockSpec((1, tile_h), lambda j: (0, j)),     # W2 row tile
                pl.BlockSpec((1, 1), lambda j: (0, 0)),          # b2 (resident)
            ],
            out_specs=pl.BlockSpec((B, 1), lambda j: (0, 0)),    # resident acc
        ),
        compiler_params=pltpu.CompilerParams(
            dimension_semantics=("arbitrary",),  # hidden axis is a reduction
        ),
    )(x, w1, b1_2d, w2_row, b2_2d)


def init_params(key, res_size, att_size, hidden=4096):
    """weights_init: Linear weights ~ N(0, 0.02), biases = 0."""
    din = res_size + att_size
    k1, k2 = jax.random.split(key)
    # fc1 weight stored transposed relative to PyTorch: [in, out].
    w1 = jax.random.normal(k1, (din, hidden), dtype=jnp.float32) * 0.02
    b1 = jnp.zeros((hidden,), dtype=jnp.float32)
    # fc2 weight kept in PyTorch's natural [out=1, in=hidden] row shape.
    w2_row = jax.random.normal(k2, (1, hidden), dtype=jnp.float32) * 0.02
    b2 = jnp.zeros((1,), dtype=jnp.float32)
    return w1, b1, w2_row, b2


def _reference(x, w1, b1, w2_row, b2):
    h = x @ w1 + b1
    h = jnp.where(h > 0, h, 0.2 * h)
    return h @ w2_row.T + b2


if __name__ == "__main__":
    # Small, forward-consistent shapes: opt.resSize=32, opt.attSize=16, batch=8.
    res_size, att_size, batch = 32, 16, 8
    key = jax.random.PRNGKey(0)
    k_x, k_p = jax.random.split(key)

    x = jax.random.normal(k_x, (batch, res_size + att_size), dtype=jnp.float32)
    w1, b1, w2_row, b2 = init_params(k_p, res_size, att_size)

    out = discriminator_forward(x, w1, b1, w2_row, b2)   # grid = (1,)
    out = jax.block_until_ready(out)

    ref = _reference(x, w1, b1, w2_row, b2)
    assert out.shape == (batch, 1)
    assert jnp.allclose(out, ref, atol=1e-4, rtol=1e-4), "mismatch vs reference"

    print("KERNEL_OK")
</pallas_src>

<mosaic_0001>
module attributes {stable_mosaic.version = 11 : i64} {
  func.func @_disc_kernel(%arg0: i32, %arg1: memref<8x48xf32, #tpu.memory_space<vmem>>, %arg2: memref<48x4096xf32, #tpu.memory_space<vmem>>, %arg3: memref<1x4096xf32, #tpu.memory_space<vmem>>, %arg4: memref<1x4096xf32, #tpu.memory_space<vmem>>, %arg5: memref<1x1xf32, #tpu.memory_space<vmem>>, %arg6: memref<8x1xf32, #tpu.memory_space<vmem>>) attributes {dimension_semantics = [#tpu.dimension_semantics<arbitrary>], iteration_bounds = array<i64: 1>, scalar_prefetch = 0 : i64, scratch_operands = 0 : i64, tpu.core_type = #tpu.core_type<tc>, window_params = [{pipeline_mode = #tpu.pipeline_mode<synchronous>, transform_indices = @transform_0, window_bounds = array<i64: 8, 48>}, {transform_indices = @transform_1, window_bounds = array<i64: 48, 4096>}, {transform_indices = @transform_2, window_bounds = array<i64: 1, 4096>}, {transform_indices = @transform_3, window_bounds = array<i64: 1, 4096>}, {pipeline_mode = #tpu.pipeline_mode<synchronous>, transform_indices = @transform_4, window_bounds = array<i64: 1, 1>}, {pipeline_mode = #tpu.pipeline_mode<synchronous>, transform_indices = @transform_5, window_bounds = array<i64: 8, 1>}]} {
    %c0_i32 = arith.constant 0 : i32
    %0 = arith.cmpi eq, %arg0, %c0_i32 : i32
    %1 = arith.extui %0 : i1 to i32
    %c0_i32_0 = arith.constant 0 : i32
    %2 = arith.cmpi ne, %1, %c0_i32_0 : i32
    scf.if %2 {
      %c0_14 = arith.constant 0 : index
      %c0_15 = arith.constant 0 : index
      %20 = vector.load %arg5[%c0_14, %c0_15] : memref<1x1xf32, #tpu.memory_space<vmem>>, vector<1x1xf32>
      %21 = vector.shape_cast %20 : vector<1x1xf32> to vector<1x1xf32>
      %22 = vector.broadcast %21 : vector<1x1xf32> to vector<8x1xf32>
      %c0_16 = arith.constant 0 : index
      %c0_17 = arith.constant 0 : index
      %23 = vector.load %arg6[%c0_16, %c0_17] : memref<8x1xf32, #tpu.memory_space<vmem>>, vector<8x1xf32>
      tpu.vector_store %arg6[%c0_16, %c0_17], %22 {strides = array<i32>} : memref<8x1xf32, #tpu.memory_space<vmem>>, vector<8x1xf32>,
    } else {
    }
    %c0 = arith.constant 0 : index
    %c0_1 = arith.constant 0 : index
    %3 = vector.load %arg1[%c0, %c0_1] : memref<8x48xf32, #tpu.memory_space<vmem>>, vector<8x48xf32>
    %c0_2 = arith.constant 0 : index
    %c0_3 = arith.constant 0 : index
    %4 = vector.load %arg2[%c0_2, %c0_3] : memref<48x4096xf32, #tpu.memory_space<vmem>>, vector<48x4096xf32>
    %cst = arith.constant dense<0.000000e+00> : vector<8x4096xf32>
    %5 = tpu.matmul %3, %4, %cst {dimension_numbers = #tpu.dot_dimension_numbers<[1], [0], [0], [1], [0, 0, 1, 1], [], []>} : vector<8x48xf32>, vector<48x4096xf32>, vector<8x4096xf32> -> vector<8x4096xf32>
    %c0_4 = arith.constant 0 : index
    %c0_5 = arith.constant 0 : index
    %6 = vector.load %arg3[%c0_4, %c0_5] : memref<1x4096xf32, #tpu.memory_space<vmem>>, vector<1x4096xf32>
    %7 = vector.broadcast %6 : vector<1x4096xf32> to vector<8x4096xf32>
    %8 = arith.addf %5, %7 : vector<8x4096xf32>
    %cst_6 = arith.constant 2.000000e-01 : f32
    %9 = vector.broadcast %cst_6 : f32 to vector<8x4096xf32>
    %10 = arith.mulf %9, %8 : vector<8x4096xf32>
    %11 = arith.maximumf %8, %10 : vector<8x4096xf32>
    %c0_7 = arith.constant 0 : index
    %c0_8 = arith.constant 0 : index
    %12 = vector.load %arg6[%c0_7, %c0_8] : memref<8x1xf32, #tpu.memory_space<vmem>>, vector<8x1xf32>
    %c0_9 = arith.constant 0 : index
    %c0_10 = arith.constant 0 : index
    %13 = vector.load %arg4[%c0_9, %c0_10] : memref<1x4096xf32, #tpu.memory_space<vmem>>, vector<1x4096xf32>
    %14 = vector.broadcast %13 : vector<1x4096xf32> to vector<8x4096xf32>
    %15 = arith.mulf %11, %14 : vector<8x4096xf32>
    %cst_11 = arith.constant dense<0.000000e+00> : vector<8xf32>
    %16 = vector.multi_reduction <add>, %15, %cst_11 [1] : vector<8x4096xf32> to vector<8xf32>
    %17 = vector.shape_cast %16 : vector<8xf32> to vector<8x1xf32>
    %18 = arith.addf %12, %17 : vector<8x1xf32>
    %c0_12 = arith.constant 0 : index
    %c0_13 = arith.constant 0 : index
    %19 = vector.load %arg6[%c0_12, %c0_13] : memref<8x1xf32, #tpu.memory_space<vmem>>, vector<8x1xf32>
    tpu.vector_store %arg6[%c0_12, %c0_13], %18 {strides = array<i32>} : memref<8x1xf32, #tpu.memory_space<vmem>>, vector<8x1xf32>,
    return
  }
  func.func @transform_0(%arg0: i32) -> (i32, i32) {
    %c0_i32 = arith.constant 0 : i32
    %c0_i32_0 = arith.constant 0 : i32
    %c0_i32_1 = arith.constant 0 : i32
    return %c0_i32, %c0_i32_0 : i32, i32
  }
  func.func @transform_1(%arg0: i32) -> (i32, i32) {
    %c0_i32 = arith.constant 0 : i32
    %c0_i32_0 = arith.constant 0 : i32
    return %c0_i32, %arg0 : i32, i32
  }
  func.func @transform_2(%arg0: i32) -> (i32, i32) {
    %c0_i32 = arith.constant 0 : i32
    %c0_i32_0 = arith.constant 0 : i32
    return %c0_i32, %arg0 : i32, i32
  }
  func.func @transform_3(%arg0: i32) -> (i32, i32) {
    %c0_i32 = arith.constant 0 : i32
    %c0_i32_0 = arith.constant 0 : i32
    return %c0_i32, %arg0 : i32, i32
  }
  func.func @transform_4(%arg0: i32) -> (i32, i32) {
    %c0_i32 = arith.constant 0 : i32
    %c0_i32_0 = arith.constant 0 : i32
    %c0_i32_1 = arith.constant 0 : i32
    return %c0_i32, %c0_i32_0 : i32, i32
  }
  func.func @transform_5(%arg0: i32) -> (i32, i32) {
    %c0_i32 = arith.constant 0 : i32
    %c0_i32_0 = arith.constant 0 : i32
    %c0_i32_1 = arith.constant 0 : i32
    return %c0_i32, %c0_i32_0 : i32, i32
  }
}

</mosaic_0001>

<llo_original>
// kernel: tpu_custom_call.1
$region0: #{tpu_custom_call.1}
  #allocation0 [shape = 'u32[]', space=smem, size = 0x4, offset = 0x4, fixed_abs, tag = 'smem constant byte address 0x4 - core index']
  #allocation1 [shape = 'u32[72,128]{1,0:T(1,128)}', space=vmem, size = 0x9000, scoped, tag = 'internal scratch']
  #allocation2 [shape = 'f32[1,1]{1,0:T(1,128)S(1)}', space=vmem, size = 0x200, scoped, tag = 'scoped memory for tpu_custom_call.1']
  %s0 = inlined_call_operand.hbm [shape: f32[8,48], index: 0, kind: input, shape index: {}]
  %s1 = inlined_call_operand.hbm [shape: f32[48,4096], index: 1, kind: input, shape index: {}]
  %s2 = inlined_call_operand.hbm [shape: f32[1,4096], index: 2, kind: input, shape index: {}]
  %s3 = inlined_call_operand.hbm [shape: f32[1,4096], index: 3, kind: input, shape index: {}]
  %s4 = inlined_call_operand.<no memory space> [shape: f32[1,1], index: 4, kind: input, shape index: {}]
  %s5 = inlined_call_operand.vmem [shape: f32[8,1], index: 5, kind: output, shape index: {}]
  %s6 = sld [smem:[#allocation0]]
  $region50: #{tpu_custom_call.1} parent=0
    _
  %s8 = ssub.s32 1, %s6
  %s9 = scalar_select 0, %s8, %s6
  %v10 = vstv %s4
  %11 = vst [vmem:[#allocation2] sm:$0x1] %v10
  $region1: #{tpu_custom_call.1} parent=0
    #allocation3 [shape = 'u8[4096]{0}', space=vmem, size = 0x1000, scoped, tag = 'input window, operand 0, single buffered']
    #allocation4 [shape = 's32[1]{0}', space=sflag, size = 0x4, scoped, tag = 'scoped memory for tpu_custom_call.1']
    #allocation5 [shape = 'u8[786432]{0}', space=vmem, size = 0xc0000, scoped, tag = 'input window, operand 1, single buffered']
    #allocation6 [shape = 's32[1]{0}', space=sflag, size = 0x4, scoped, tag = 'scoped memory for tpu_custom_call.1']
    #allocation7 [shape = 'u8[16384]{0}', space=vmem, size = 0x4000, scoped, tag = 'input window, operand 2, single buffered']
    #allocation8 [shape = 'u8[16384]{0}', space=vmem, size = 0x4000, scoped, tag = 'input window, operand 3, single buffered']
    #allocation9 [shape = 's32[1]{0}', space=sflag, size = 0x4, scoped, tag = 'scoped memory for tpu_custom_call.1']
    %12 = vsyncpa [#allocation4], 0
    %13 = vsyncpa [#allocation6], 0
    %14 = vsyncpa [#allocation9], 0
    // Predicated region
    $region2: #{tpu_custom_call.1} parent=1 // pred_check
      _
    $region3: #{tpu_custom_call.1} parent=1 // pred_check_branch
      %16 = sbr.rel (0) target = $region5
    $region4: #{tpu_custom_call.1} parent=1 // pred_region
      %18 = vsyncadd [#allocation4], 0
      %s20 = sshll.u32 %s0, 4
      %s21 = int_to_ptr.hbm [resolvable:$true] %s20
      %s22 = sshll.u32 [#allocation3], 4
      %s23 = int_to_ptr.vmem [resolvable:$true] %s22
      %25 = dma.hbm_to_vmem [thread:$0]  %s21, 128, %s23, [#allocation4]
    $region5: #{tpu_custom_call.1} parent=1 // pred_fallthru
      _
    // Predicated region
    $region6: #{tpu_custom_call.1} parent=1 // pred_check
      _
    $region7: #{tpu_custom_call.1} parent=1 // pred_check_branch
      %27 = sbr.rel (0) target = $region9
    $region8: #{tpu_custom_call.1} parent=1 // pred_region
      %29 = vsyncadd [#allocation6], 0
      %s30 = sshll.u32 %s1, 4
      %s31 = int_to_ptr.hbm [resolvable:$true] %s30
      %s32 = sshll.u32 [#allocation5], 4
      %s33 = int_to_ptr.vmem [resolvable:$true] %s32
      %38 = dma.hbm_to_vmem [thread:$0]  %s31, 24576, %s33, [#allocation6], 4096, 4096, 256
    $region9: #{tpu_custom_call.1} parent=1 // pred_fallthru
      _
    // Predicated region
    $region10: #{tpu_custom_call.1} parent=1 // pred_check
      _
    $region11: #{tpu_custom_call.1} parent=1 // pred_check_branch
      %40 = sbr.rel (0) target = $region13
    $region12: #{tpu_custom_call.1} parent=1 // pred_region
      %42 = vsyncadd [#allocation6], 0
      %s44 = sshll.u32 %s2, 4
      %s45 = int_to_ptr.hbm [resolvable:$true] %s44
      %s46 = sshll.u32 [#allocation7], 4
      %s47 = int_to_ptr.vmem [resolvable:$true] %s46
      %49 = dma.hbm_to_vmem [thread:$0]  %s45, 512, %s47, [#allocation6]
    $region13: #{tpu_custom_call.1} parent=1 // pred_fallthru
      _
    // Predicated region
    $region14: #{tpu_custom_call.1} parent=1 // pred_check
      _
    $region15: #{tpu_custom_call.1} parent=1 // pred_check_branch
      %51 = sbr.rel (0) target = $region17
    $region16: #{tpu_custom_call.1} parent=1 // pred_region
      %53 = vsyncadd [#allocation9], 0
      %s55 = sshll.u32 %s3, 4
      %s56 = int_to_ptr.hbm [resolvable:$true] %s55
      %s57 = sshll.u32 [#allocation8], 4
      %s58 = int_to_ptr.vmem [resolvable:$true] %s57
      %60 = dma.hbm_to_vmem [thread:$0]  %s56, 512, %s58, [#allocation9]
    $region17: #{tpu_custom_call.1} parent=1 // pred_fallthru
      _
    // Predicated region
    $region18: #{tpu_custom_call.1} parent=1 // pred_check
      _
    $region19: #{tpu_custom_call.1} parent=1 // pred_check_branch
      %62 = sbr.rel (0) target = $region21
    $region20: #{tpu_custom_call.1} parent=1 // pred_region
      _
    $region21: #{tpu_custom_call.1} parent=1 // pred_fallthru
      _
    // Predicated region
    $region22: #{tpu_custom_call.1} parent=1 // pred_check
      _
    $region23: #{tpu_custom_call.1} parent=1 // pred_check_branch
      %64 = sbr.rel (0) target = $region25
    $region24: #{tpu_custom_call.1} parent=1 // pred_region
      %66 = dma.done [#allocation4], 128
    $region25: #{tpu_custom_call.1} parent=1 // pred_fallthru
      _
    // Predicated region
    $region26: #{tpu_custom_call.1} parent=1 // pred_check
      _
    $region27: #{tpu_custom_call.1} parent=1 // pred_check_branch
      %68 = sbr.rel (0) target = $region29
    $region28: #{tpu_custom_call.1} parent=1 // pred_region
      %70 = dma.done [#allocation6], 24576
    $region29: #{tpu_custom_call.1} parent=1 // pred_fallthru
      _
    // Predicated region
    $region30: #{tpu_custom_call.1} parent=1 // pred_check
      _
    $region31: #{tpu_custom_call.1} parent=1 // pred_check_branch
      %72 = sbr.rel (0) target = $region33
    $region32: #{tpu_custom_call.1} parent=1 // pred_region
      %74 = dma.done [#allocation6], 512
    $region33: #{tpu_custom_call.1} parent=1 // pred_fallthru
      _
    // Predicated region
    $region34: #{tpu_custom_call.1} parent=1 // pred_check
      _
    $region35: #{tpu_custom_call.1} parent=1 // pred_check_branch
      %76 = sbr.rel (0) target = $region37
    $region36: #{tpu_custom_call.1} parent=1 // pred_region
      %78 = dma.done [#allocation9], 512
    $region37: #{tpu_custom_call.1} parent=1 // pred_fallthru
      _
    %p79 = scmp.eq.s32.totalorder 0, 0
    // Predicated region
    $region38: #{tpu_custom_call.1} parent=1 // pred_check
      %p80 = pneg %p79
    $region39: #{tpu_custom_call.1} parent=1 // pred_check_branch
      %82 = sbr.rel (%p80) target = $region41
    $region40: #{tpu_custom_call.1} parent=1 // pred_region
      %v83 = vld [vmem:[#allocation2] sm:$0x1]
      %v85 = vperm.slane %v83, 0
      %vm87 = vcmask 7168
      %88 = vst.msk [vmem:[%s5] sm:$0xff] %vm87, %v85
    $region41: #{tpu_custom_call.1} parent=1 // pred_fallthru
      _
    %v89 = vld [vmem:[#allocation3] sm:$0xff]
    %v90 = vld [vmem:[#allocation5] sm:$0xff]
    %v91 = vld [vmem:[#allocation5 + $0x8] sm:$0xff]
    %v92 = vld [vmem:[#allocation5 + $0x10] sm:$0xff]
    %v93 = vld [vmem:[#allocation5 + $0x18] sm:$0xff]
    %v94 = vld [vmem:[#allocation5 + $0x20] sm:$0xff]
    %v95 = vld [vmem:[#allocation5 + $0x28] sm:$0xff]
    %v96 = vld [vmem:[#allocation5 + $0x30] sm:$0xff]
    %v97 = vld [vmem:[#allocation5 + $0x38] sm:$0xff]
    %v98 = vld [vmem:[#allocation5 + $0x40] sm:$0xff]
    %v99 = vld [vmem:[#allocation5 + $0x48] sm:$0xff]
    %v100 = vld [vmem:[#allocation5 + $0x50] sm:$0xff]
    %v101 = vld [vmem:[#allocation5 + $0x58] sm:$0xff]
    %v102 = vld [vmem:[#allocation5 + $0x60] sm:$0xff]
    %v103 = vld [vmem:[#allocation5 + $0x68] sm:$0xff]
    %v104 = vld [vmem:[#allocation5 + $0x70] sm:$0xff]
    %v105 = vld [vmem:[#allocation5 + $0x78] sm:$0xff]
    %v106 = vld [vmem:[#allocation5 + $0x80] sm:$0xff]
    %v107 = vld [vmem:[#allocation5 + $0x88] sm:$0xff]
    %v108 = vld [vmem:[#allocation5 + $0x90] sm:$0xff]
    %v109 = vld [vmem:[#allocation5 + $0x98] sm:$0xff]
    %v110 = vld [vmem:[#allocation5 + $0xa0] sm:$0xff]
    %v111 = vld [vmem:[#allocation5 + $0xa8] sm:$0xff]
    %v112 = vld [vmem:[#allocation5 + $0xb0] sm:$0xff]
    %v113 = vld [vmem:[#allocation5 + $0xb8] sm:$0xff]
    %v114 = vld [vmem:[#allocation5 + $0xc0] sm:$0xff]
    %v115 = vld [vmem:[#allocation5 + $0xc8] sm:$0xff]
    %v116 = vld [vmem:[#allocation5 + $0xd0] sm:$0xff]
    %v117 = vld [vmem:[#allocation5 + $0xd8] sm:$0xff]
    %v118 = vld [vmem:[#allocation5 + $0xe0] sm:$0xff]
    %v119 = vld [vmem:[#allocation5 + $0xe8] sm:$0xff]
    %v120 = vld [vmem:[#allocation5 + $0xf0] sm:$0xff]
    %v121 = vld [vmem:[#allocation5 + $0xf8] sm:$0xff]
    %v122 = vld [vmem:[#allocation5 + $0x100] sm:$0xff]
    %v123 = vld [vmem:[#allocation5 + $0x108] sm:$0xff]
    %v124 = vld [vmem:[#allocation5 + $0x110] sm:$0xff]
    %v125 = vld [vmem:[#allocation5 + $0x118] sm:$0xff]
    %v126 = vld [vmem:[#allocation5 + $0x120] sm:$0xff]
    %v127 = vld [vmem:[#allocation5 + $0x128] sm:$0xff]
    %v128 = vld [vmem:[#allocation5 + $0x130] sm:$0xff]
    %v129 = vld [vmem:[#allocation5 + $0x138] sm:$0xff]
    %v130 = vld [vmem:[#allocation5 + $0x140] sm:$0xff]
    %v131 = vld [vmem:[#allocation5 + $0x148] sm:$0xff]
    %v132 = vld [vmem:[#allocation5 + $0x150] sm:$0xff]
    %v133 = vld [vmem:[#allocation5 + $0x158] sm:$0xff]
    %v134 = vld [vmem:[#allocation5 + $0x160] sm:$0xff]
    %v135 = vld [vmem:[#allocation5 + $0x168] sm:$0xff]
    %v136 = vld [vmem:[#allocation5 + $0x170] sm:$0xff]
    %v137 = vld [vmem:[#allocation5 + $0x178] sm:$0xff]
    %v138 = vld [vmem:[#allocation5 + $0x180] sm:$0xff]
    %v139 = vld [vmem:[#allocation5 + $0x188] sm:$0xff]
    %v140 = vld [vmem:[#allocation5 + $0x190] sm:$0xff]
    %v141 = vld [vmem:[#allocation5 + $0x198] sm:$0xff]
    %v142 = vld [vmem:[#allocation5 + $0x1a0] sm:$0xff]
    %v143 = vld [vmem:[#allocation5 + $0x1a8] sm:$0xff]
    %v144 = vld [vmem:[#allocation5 + $0x1b0] sm:$0xff]
    %v145 = vld [vmem:[#allocation5 + $0x1b8] sm:$0xff]
    %v146 = vld [vmem:[#allocation5 + $0x1c0] sm:$0xff]
    %v147 = vld [vmem:[#allocation5 + $0x1c8] sm:$0xff]
    %v148 = vld [vmem:[#allocation5 + $0x1d0] sm:$0xff]
    %v149 = vld [vmem:[#allocation5 + $0x1d8] sm:$0xff]
    %v150 = vld [vmem:[#allocation5 + $0x1e0] sm:$0xff]
    %v151 = vld [vmem:[#allocation5 + $0x1e8] sm:$0xff]
    %v152 = vld [vmem:[#allocation5 + $0x1f0] sm:$0xff]
    %v153 = vld [vmem:[#allocation5 + $0x1f8] sm:$0xff]
    %v154 = vld [vmem:[#allocation5 + $0x200] sm:$0xff]
    %v155 = vld [vmem:[#allocation5 + $0x208] sm:$0xff]
    %v156 = vld [vmem:[#allocation5 + $0x210] sm:$0xff]
    %v157 = vld [vmem:[#allocation5 + $0x218] sm:$0xff]
    %v158 = vld [vmem:[#allocation5 + $0x220] sm:$0xff]
    %v159 = vld [vmem:[#allocation5 + $0x228] sm:$0xff]
    %v160 = vld [vmem:[#allocation5 + $0x230] sm:$0xff]
    %v161 = vld [vmem:[#allocation5 + $0x238] sm:$0xff]
    %v162 = vld [vmem:[#allocation5 + $0x240] sm:$0xff]
    %v163 = vld [vmem:[#allocation5 + $0x248] sm:$0xff]
    %v164 = vld [vmem:[#allocation5 + $0x250] sm:$0xff]
    %v165 = vld [vmem:[#allocation5 + $0x258] sm:$0xff]
    %v166 = vld [vmem:[#allocation5 + $0x260] sm:$0xff]
    %v167 = vld [vmem:[#allocation5 + $0x268] sm:$0xff]
    %v168 = vld [vmem:[#allocation5 + $0x270] sm:$0xff]
    %v169 = vld [vmem:[#allocation5 + $0x278] sm:$0xff]
    %v170 = vld [vmem:[#allocation5 + $0x280] sm:$0xff]
    %v171 = vld [vmem:[#allocation5 + $0x288] sm:$0xff]
    %v172 = vld [vmem:[#allocation5 + $0x290] sm:$0xff]
    %v173 = vld [vmem:[#allocation5 + $0x298] sm:$0xff]
    %v174 = vld [vmem:[#allocation5 + $0x2a0] sm:$0xff]
    %v175 = vld [vmem:[#allocation5 + $0x2a8] sm:$0xff]
    %v176 = vld [vmem:[#allocation5 + $0x2b0] sm:$0xff]
    %v177 = vld [vmem:[#allocation5 + $0x2b8] sm:$0xff]
    %v178 = vld [vmem:[#allocation5 + $0x2c0] sm:$0xff]
    %v179 = vld [vmem:[#allocation5 + $0x2c8] sm:$0xff]
    %v180 = vld [vmem:[#allocation5 + $0x2d0] sm:$0xff]
    %v181 = vld [vmem:[#allocation5 + $0x2d8] sm:$0xff]
    %v182 = vld [vmem:[#allocation5 + $0x2e0] sm:$0xff]
    %v183 = vld [vmem:[#allocation5 + $0x2e8] sm:$0xff]
    %v184 = vld [vmem:[#allocation5 + $0x2f0] sm:$0xff]
    %v185 = vld [vmem:[#allocation5 + $0x2f8] sm:$0xff]
    %v186 = vld [vmem:[#allocation5 + $0x300] sm:$0xff]
    %v187 = vld [vmem:[#allocation5 + $0x308] sm:$0xff]
    %v188 = vld [vmem:[#allocation5 + $0x310] sm:$0xff]
    %v189 = vld [vmem:[#allocation5 + $0x318] sm:$0xff]
    %v190 = vld [vmem:[#allocation5 + $0x320] sm:$0xff]
    %v191 = vld [vmem:[#allocation5 + $0x328] sm:$0xff]
    %v192 = vld [vmem:[#allocation5 + $0x330] sm:$0xff]
    %v193 = vld [vmem:[#allocation5 + $0x338] sm:$0xff]
    %v194 = vld [vmem:[#allocation5 + $0x340] sm:$0xff]
    %v195 = vld [vmem:[#allocation5 + $0x348] sm:$0xff]
    %v196 = vld [vmem:[#allocation5 + $0x350] sm:$0xff]
    %v197 = vld [vmem:[#allocation5 + $0x358] sm:$0xff]
    %v198 = vld [vmem:[#allocation5 + $0x360] sm:$0xff]
    %v199 = vld [vmem:[#allocation5 + $0x368] sm:$0xff]
    %v200 = vld [vmem:[#allocation5 + $0x370] sm:$0xff]
    %v201 = vld [vmem:[#allocation5 + $0x378] sm:$0xff]
    %v202 = vld [vmem:[#allocation5 + $0x380] sm:$0xff]
    %v203 = vld [vmem:[#allocation5 + $0x388] sm:$0xff]
    %v204 = vld [vmem:[#allocation5 + $0x390] sm:$0xff]
    %v205 = vld [vmem:[#allocation5 + $0x398] sm:$0xff]
    %v206 = vld [vmem:[#allocation5 + $0x3a0] sm:$0xff]
    %v207 = vld [vmem:[#allocation5 + $0x3a8] sm:$0xff]
    %v208 = vld [vmem:[#allocation5 + $0x3b0] sm:$0xff]
    %v209 = vld [vmem:[#allocation5 + $0x3b8] sm:$0xff]
    %v210 = vld [vmem:[#allocation5 + $0x3c0] sm:$0xff]
    %v211 = vld [vmem:[#allocation5 + $0x3c8] sm:$0xff]
    %v212 = vld [vmem:[#allocation5 + $0x3d0] sm:$0xff]
    %v213 = vld [vmem:[#allocation5 + $0x3d8] sm:$0xff]
    %v214 = vld [vmem:[#allocation5 + $0x3e0] sm:$0xff]
    %v215 = vld [vmem:[#allocation5 + $0x3e8] sm:$0xff]
    %v216 = vld [vmem:[#allocation5 + $0x3f0] sm:$0xff]
    %v217 = vld [vmem:[#allocation5 + $0x3f8] sm:$0xff]
    %v218 = vld [vmem:[#allocation5 + $0x400] sm:$0xff]
    %v219 = vld [vmem:[#allocation5 + $0x408] sm:$0xff]
    %v220 = vld [vmem:[#allocation5 + $0x410] sm:$0xff]
    %v221 = vld [vmem:[#allocation5 + $0x418] sm:$0xff]
    %v222 = vld [vmem:[#allocation5 + $0x420] sm:$0xff]
    %v223 = vld [vmem:[#allocation5 + $0x428] sm:$0xff]
    %v224 = vld [vmem:[#allocation5 + $0x430] sm:$0xff]
    %v225 = vld [vmem:[#allocation5 + $0x438] sm:$0xff]
    %v226 = vld [vmem:[#allocation5 + $0x440] sm:$0xff]
    %v227 = vld [vmem:[#allocation5 + $0x448] sm:$0xff]
    %v228 = vld [vmem:[#allocation5 + $0x450] sm:$0xff]
    %v229 = vld [vmem:[#allocation5 + $0x458] sm:$0xff]
    %v230 = vld [vmem:[#allocation5 + $0x460] sm:$0xff]
    %v231 = vld [vmem:[#allocation5 + $0x468] sm:$0xff]
    %v232 = vld [vmem:[#allocation5 + $0x470] sm:$0xff]
    %v233 = vld [vmem:[#allocation5 + $0x478] sm:$0xff]
    %v234 = vld [vmem:[#allocation5 + $0x480] sm:$0xff]
    %v235 = vld [vmem:[#allocation5 + $0x488] sm:$0xff]
    %v236 = vld [vmem:[#allocation5 + $0x490] sm:$0xff]
    %v237 = vld [vmem:[#allocation5 + $0x498] sm:$0xff]
    %v238 = vld [vmem:[#allocation5 + $0x4a0] sm:$0xff]
    %v239 = vld [vmem:[#allocation5 + $0x4a8] sm:$0xff]
    %v240 = vld [vmem:[#allocation5 + $0x4b0] sm:$0xff]
    %v241 = vld [vmem:[#allocation5 + $0x4b8] sm:$0xff]
    %v242 = vld [vmem:[#allocation5 + $0x4c0] sm:$0xff]
    %v243 = vld [vmem:[#allocation5 + $0x4c8] sm:$0xff]
    %v244 = vld [vmem:[#allocation5 + $0x4d0] sm:$0xff]
    %v245 = vld [vmem:[#allocation5 + $0x4d8] sm:$0xff]
    %v246 = vld [vmem:[#allocation5 + $0x4e0] sm:$0xff]
    %v247 = vld [vmem:[#allocation5 + $0x4e8] sm:$0xff]
    %v248 = vld [vmem:[#allocation5 + $0x4f0] sm:$0xff]
    %v249 = vld [vmem:[#allocation5 + $0x4f8] sm:$0xff]
    %v250 = vld [vmem:[#allocation5 + $0x500] sm:$0xff]
    %v251 = vld [vmem:[#allocation5 + $0x508] sm:$0xff]
    %v252 = vld [vmem:[#allocation5 + $0x510] sm:$0xff]
    %v253 = vld [vmem:[#allocation5 + $0x518] sm:$0xff]
    %v254 = vld [vmem:[#allocation5 + $0x520] sm:$0xff]
    %v255 = vld [vmem:[#allocation5 + $0x528] sm:$0xff]
    %v256 = vld [vmem:[#allocation5 + $0x530] sm:$0xff]
    %v257 = vld [vmem:[#allocation5 + $0x538] sm:$0xff]
    %v258 = vld [vmem:[#allocation5 + $0x540] sm:$0xff]
    %v259 = vld [vmem:[#allocation5 + $0x548] sm:$0xff]
    %v260 = vld [vmem:[#allocation5 + $0x550] sm:$0xff]
    %v261 = vld [vmem:[#allocation5 + $0x558] sm:$0xff]
    %v262 = vld [vmem:[#allocation5 + $0x560] sm:$0xff]
    %v263 = vld [vmem:[#allocation5 + $0x568] sm:$0xff]
    %v264 = vld [vmem:[#allocation5 + $0x570] sm:$0xff]
    %v265 = vld [vmem:[#allocation5 + $0x578] sm:$0xff]
    %v266 = vld [vmem:[#allocation5 + $0x580] sm:$0xff]
    %v267 = vld [vmem:[#allocation5 + $0x588] sm:$0xff]
    %v268 = vld [vmem:[#allocation5 + $0x590] sm:$0xff]
    %v269 = vld [vmem:[#allocation5 + $0x598] sm:$0xff]
    %v270 = vld [vmem:[#allocation5 + $0x5a0] sm:$0xff]
    %v271 = vld [vmem:[#allocation5 + $0x5a8] sm:$0xff]
    %v272 = vld [vmem:[#allocation5 + $0x5b0] sm:$0xff]
    %v273 = vld [vmem:[#allocation5 + $0x5b8] sm:$0xff]
    %v274 = vld [vmem:[#allocation5 + $0x5c0] sm:$0xff]
    %v275 = vld [vmem:[#allocation5 + $0x5c8] sm:$0xff]
    %v276 = vld [vmem:[#allocation5 + $0x5d0] sm:$0xff]
    %v277 = vld [vmem:[#allocation5 + $0x5d8] sm:$0xff]
    %v278 = vld [vmem:[#allocation5 + $0x5e0] sm:$0xff]
    %v279 = vld [vmem:[#allocation5 + $0x5e8] sm:$0xff]
    %v280 = vld [vmem:[#allocation5 + $0x5f0] sm:$0xff]
    %v281 = vld [vmem:[#allocation5 + $0x5f8] sm:$0xff]
    %v282 = vld [vmem:[#allocation7] sm:$0xff]
    %v283 = vld [vmem:[#allocation7 + $0x8] sm:$0xff]
    %v284 = vld [vmem:[#allocation7 + $0x10] sm:$0xff]
    %v285 = vld [vmem:[#allocation7 + $0x18] sm:$0xff]
    %v290 = vperm.slane %v282, 0
    %v291 = vperm.slane %v282, 1
    %v292 = vperm.slane %v282, 2
    %v293 = vperm.slane %v282, 3
    %v294 = vperm.slane %v282, 4
    %v295 = vperm.slane %v282, 5
    %v296 = vperm.slane %v282, 6
    %v297 = vperm.slane %v282, 7
    %v298 = vperm.slane %v283, 0
    %v299 = vperm.slane %v283, 1
    %v300 = vperm.slane %v283, 2
    %v301 = vperm.slane %v283, 3
    %v302 = vperm.slane %v283, 4
    %v303 = vperm.slane %v283, 5
    %v304 = vperm.slane %v283, 6
    %v305 = vperm.slane %v283, 7
    %v306 = vperm.slane %v284, 0
    %v307 = vperm.slane %v284, 1
    %v308 = vperm.slane %v284, 2
    %v309 = vperm.slane %v284, 3
    %v310 = vperm.slane %v284, 4
    %v311 = vperm.slane %v284, 5
    %v312 = vperm.slane %v284, 6
    %v313 = vperm.slane %v284, 7
    %v314 = vperm.slane %v285, 0
    %v315 = vperm.slane %v285, 1
    %v316 = vperm.slane %v285, 2
    %v317 = vperm.slane %v285, 3
    %v318 = vperm.slane %v285, 4
    %v319 = vperm.slane %v285, 5
    %v320 = vperm.slane %v285, 6
    %v321 = vperm.slane %v285, 7
    %vm354 = vcmask 392192
    %v356 = vsel %vm354, %v89, 0
    %358 = vmatpush.msra.mxu0 0.0
    %359 = vmatpush.msra.mxu0 0.0
    %360 = vmatpush.msra.mxu0 0.0
    %361 = vmatpush.msra.mxu0 0.0
    %362 = vmatpush.msra.mxu0 0.0
    %363 = vmatpush.msra.mxu0 0.0
    %364 = vmatpush.msra.mxu0 0.0
    %365 = vmatpush.msra.mxu0 0.0
    %366 = vmatpush.msra.mxu0 0.0
    %367 = vmatpush.msra.mxu0 0.0
    %368 = vmatpush.msra.mxu0 %v250
    %369 = vmatpush.msra.mxu0 %v218
    %370 = vmatpush.msra.mxu0 %v186
    %371 = vmatpush.msra.mxu0 %v154
    %372 = vmatpush.msra.mxu0 %v122
    %373 = vmatpush.msra.mxu0 %v90
    %374 = vmatmul.f32.gmra.mxu0 %v356
    %v375 = vpop.f32.mrf.mxu0
    %v376 = vadd.f32 %v290, %v375
    %377 = vdwg.mxu0
    %378 = vmatpush.msra.mxu0 0.0
    %379 = vmatpush.msra.mxu0 0.0
    %380 = vmatpush.msra.mxu0 0.0
    %381 = vmatpush.msra.mxu0 0.0
    %382 = vmatpush.msra.mxu0 0.0
    %383 = vmatpush.msra.mxu0 0.0
    %384 = vmatpush.msra.mxu0 0.0
    %385 = vmatpush.msra.mxu0 0.0
    %386 = vmatpush.msra.mxu0 0.0
    %387 = vmatpush.msra.mxu0 0.0
    %388 = vmatpush.msra.mxu0 %v251
    %389 = vmatpush.msra.mxu0 %v219
    %390 = vmatpush.msra.mxu0 %v187
    %391 = vmatpush.msra.mxu0 %v155
    %392 = vmatpush.msra.mxu0 %v123
    %393 = vmatpush.msra.mxu0 %v91
    %394 = vmatmul.f32.gmra.mxu0 %v356
    %v395 = vpop.f32.mrf.mxu0
    %v396 = vadd.f32 %v291, %v395
    %397 = vdwg.mxu0
    %398 = vmatpush.msra.mxu0 0.0
    %399 = vmatpush.msra.mxu0 0.0
    %400 = vmatpush.msra.mxu0 0.0
    %401 = vmatpush.msra.mxu0 0.0
    %402 = vmatpush.msra.mxu0 0.0
    %403 = vmatpush.msra.mxu0 0.0
    %404 = vmatpush.msra.mxu0 0.0
    %405 = vmatpush.msra.mxu0 0.0
    %406 = vmatpush.msra.mxu0 0.0
    %407 = vmatpush.msra.mxu0 0.0
    %408 = vmatpush.msra.mxu0 %v252
    %409 = vmatpush.msra.mxu0 %v220
    %410 = vmatpush.msra.mxu0 %v188
    %411 = vmatpush.msra.mxu0 %v156
    %412 = vmatpush.msra.mxu0 %v124
    %413 = vmatpush.msra.mxu0 %v92
    %414 = vmatmul.f32.gmra.mxu0 %v356
    %v415 = vpop.f32.mrf.mxu0
    %v416 = vadd.f32 %v292, %v415
    %417 = vdwg.mxu0
    %418 = vmatpush.msra.mxu0 0.0
    %419 = vmatpush.msra.mxu0 0.0
    %420 = vmatpush.msra.mxu0 0.0
    %421 = vmatpush.msra.mxu0 0.0
    %422 = vmatpush.msra.mxu0 0.0
    %423 = vmatpush.msra.mxu0 0.0
    %424 = vmatpush.msra.mxu0 0.0
    %425 = vmatpush.msra.mxu0 0.0
    %426 = vmatpush.msra.mxu0 0.0
    %427 = vmatpush.msra.mxu0 0.0
    %428 = vmatpush.msra.mxu0 %v253
    %429 = vmatpush.msra.mxu0 %v221
    %430 = vmatpush.msra.mxu0 %v189
    %431 = vmatpush.msra.mxu0 %v157
    %432 = vmatpush.msra.mxu0 %v125
    %433 = vmatpush.msra.mxu0 %v93
    %434 = vmatmul.f32.gmra.mxu0 %v356
    %v435 = vpop.f32.mrf.mxu0
    %v436 = vadd.f32 %v293, %v435
    %437 = vdwg.mxu0
    %438 = vmatpush.msra.mxu0 0.0
    %439 = vmatpush.msra.mxu0 0.0
    %440 = vmatpush.msra.mxu0 0.0
    %441 = vmatpush.msra.mxu0 0.0
    %442 = vmatpush.msra.mxu0 0.0
    %443 = vmatpush.msra.mxu0 0.0
    %444 = vmatpush.msra.mxu0 0.0
    %445 = vmatpush.msra.mxu0 0.0
    %446 = vmatpush.msra.mxu0 0.0
    %447 = vmatpush.msra.mxu0 0.0
    %448 = vmatpush.msra.mxu0 %v254
    %449 = vmatpush.msra.mxu0 %v222
    %450 = vmatpush.msra.mxu0 %v190
    %451 = vmatpush.msra.mxu0 %v158
    %452 = vmatpush.msra.mxu0 %v126
    %453 = vmatpush.msra.mxu0 %v94
    %454 = vmatmul.f32.gmra.mxu0 %v356
    %v455 = vpop.f32.mrf.mxu0
    %v456 = vadd.f32 %v294, %v455
    %457 = vdwg.mxu0
    %458 = vmatpush.msra.mxu0 0.0
    %459 = vmatpush.msra.mxu0 0.0
    %460 = vmatpush.msra.mxu0 0.0
    %461 = vmatpush.msra.mxu0 0.0
    %462 = vmatpush.msra.mxu0 0.0
    %463 = vmatpush.msra.mxu0 0.0
    %464 = vmatpush.msra.mxu0 0.0
    %465 = vmatpush.msra.mxu0 0.0
    %466 = vmatpush.msra.mxu0 0.0
    %467 = vmatpush.msra.mxu0 0.0
    %468 = vmatpush.msra.mxu0 %v255
    %469 = vmatpush.msra.mxu0 %v223
    %470 = vmatpush.msra.mxu0 %v191
    %471 = vmatpush.msra.mxu0 %v159
    %472 = vmatpush.msra.mxu0 %v127
    %473 = vmatpush.msra.mxu0 %v95
    %474 = vmatmul.f32.gmra.mxu0 %v356
    %v475 = vpop.f32.mrf.mxu0
    %v476 = vadd.f32 %v295, %v475
    %477 = vdwg.mxu0
    %478 = vmatpush.msra.mxu0 0.0
    %479 = vmatpush.msra.mxu0 0.0
    %480 = vmatpush.msra.mxu0 0.0
    %481 = vmatpush.msra.mxu0 0.0
    %482 = vmatpush.msra.mxu0 0.0
    %483 = vmatpush.msra.mxu0 0.0
    %484 = vmatpush.msra.mxu0 0.0
    %485 = vmatpush.msra.mxu0 0.0
    %486 = vmatpush.msra.mxu0 0.0
    %487 = vmatpush.msra.mxu0 0.0
    %488 = vmatpush.msra.mxu0 %v256
    %489 = vmatpush.msra.mxu0 %v224
    %490 = vmatpush.msra.mxu0 %v192
    %491 = vmatpush.msra.mxu0 %v160
    %492 = vmatpush.msra.mxu0 %v128
    %493 = vmatpush.msra.mxu0 %v96
    %494 = vmatmul.f32.gmra.mxu0 %v356
    %v495 = vpop.f32.mrf.mxu0
    %v496 = vadd.f32 %v296, %v495
    %497 = vdwg.mxu0
    %498 = vmatpush.msra.mxu0 0.0
    %499 = vmatpush.msra.mxu0 0.0
    %500 = vmatpush.msra.mxu0 0.0
    %501 = vmatpush.msra.mxu0 0.0
    %502 = vmatpush.msra.mxu0 0.0
    %503 = vmatpush.msra.mxu0 0.0
    %504 = vmatpush.msra.mxu0 0.0
    %505 = vmatpush.msra.mxu0 0.0
    %506 = vmatpush.msra.mxu0 0.0
    %507 = vmatpush.msra.mxu0 0.0
    %508 = vmatpush.msra.mxu0 %v257
    %509 = vmatpush.msra.mxu0 %v225
    %510 = vmatpush.msra.mxu0 %v193
    %511 = vmatpush.msra.mxu0 %v161
    %512 = vmatpush.msra.mxu0 %v129
    %513 = vmatpush.msra.mxu0 %v97
    %514 = vmatmul.f32.gmra.mxu0 %v356
    %v515 = vpop.f32.mrf.mxu0
    %v516 = vadd.f32 %v297, %v515
    %517 = vdwg.mxu0
    %518 = vmatpush.msra.mxu0 0.0
    %519 = vmatpush.msra.mxu0 0.0
    %520 = vmatpush.msra.mxu0 0.0
    %521 = vmatpush.msra.mxu0 0.0
    %522 = vmatpush.msra.mxu0 0.0
    %523 = vmatpush.msra.mxu0 0.0
    %524 = vmatpush.msra.mxu0 0.0
    %525 = vmatpush.msra.mxu0 0.0
    %526 = vmatpush.msra.mxu0 0.0
    %527 = vmatpush.msra.mxu0 0.0
    %528 = vmatpush.msra.mxu0 %v258
    %529 = vmatpush.msra.mxu0 %v226
    %530 = vmatpush.msra.mxu0 %v194
    %531 = vmatpush.msra.mxu0 %v162
    %532 = vmatpush.msra.mxu0 %v130
    %533 = vmatpush.msra.mxu0 %v98
    %534 = vmatmul.f32.gmra.mxu0 %v356
    %v535 = vpop.f32.mrf.mxu0
    %v536 = vadd.f32 %v298, %v535
    %537 = vdwg.mxu0
    %538 = vmatpush.msra.mxu0 0.0
    %539 = vmatpush.msra.mxu0 0.0
    %540 = vmatpush.msra.mxu0 0.0
    %541 = vmatpush.msra.mxu0 0.0
    %542 = vmatpush.msra.mxu0 0.0
    %543 = vmatpush.msra.mxu0 0.0
    %544 = vmatpush.msra.mxu0 0.0
    %545 = vmatpush.msra.mxu0 0.0
    %546 = vmatpush.msra.mxu0 0.0
    %547 = vmatpush.msra.mxu0 0.0
    %548 = vmatpush.msra.mxu0 %v259
    %549 = vmatpush.msra.mxu0 %v227
    %550 = vmatpush.msra.mxu0 %v195
    %551 = vmatpush.msra.mxu0 %v163
    %552 = vmatpush.msra.mxu0 %v131
    %553 = vmatpush.msra.mxu0 %v99
    %554 = vmatmul.f32.gmra.mxu0 %v356
    %v555 = vpop.f32.mrf.mxu0
    %v556 = vadd.f32 %v299, %v555
    %557 = vdwg.mxu0
    %558 = vmatpush.msra.mxu0 0.0
    %559 = vmatpush.msra.mxu0 0.0
    %560 = vmatpush.msra.mxu0 0.0
    %561 = vmatpush.msra.mxu0 0.0
    %562 = vmatpush.msra.mxu0 0.0
    %563 = vmatpush.msra.mxu0 0.0
    %564 = vmatpush.msra.mxu0 0.0
    %565 = vmatpush.msra.mxu0 0.0
    %566 = vmatpush.msra.mxu0 0.0
    %567 = vmatpush.msra.mxu0 0.0
    %568 = vmatpush.msra.mxu0 %v260
    %569 = vmatpush.msra.mxu0 %v228
    %570 = vmatpush.msra.mxu0 %v196
    %571 = vmatpush.msra.mxu0 %v164
    %572 = vmatpush.msra.mxu0 %v132
    %573 = vmatpush.msra.mxu0 %v100
    %574 = vmatmul.f32.gmra.mxu0 %v356
    %v575 = vpop.f32.mrf.mxu0
    %v576 = vadd.f32 %v300, %v575
    %577 = vdwg.mxu0
    %578 = vmatpush.msra.mxu0 0.0
    %579 = vmatpush.msra.mxu0 0.0
    %580 = vmatpush.msra.mxu0 0.0
    %581 = vmatpush.msra.mxu0 0.0
    %582 = vmatpush.msra.mxu0 0.0
    %583 = vmatpush.msra.mxu0 0.0
    %584 = vmatpush.msra.mxu0 0.0
    %585 = vmatpush.msra.mxu0 0.0
    %586 = vmatpush.msra.mxu0 0.0
    %587 = vmatpush.msra.mxu0 0.0
    %588 = vmatpush.msra.mxu0 %v261
    %589 = vmatpush.msra.mxu0 %v229
    %590 = vmatpush.msra.mxu0 %v197
    %591 = vmatpush.msra.mxu0 %v165
    %592 = vmatpush.msra.mxu0 %v133
    %593 = vmatpush.msra.mxu0 %v101
    %594 = vmatmul.f32.gmra.mxu0 %v356
    %v595 = vpop.f32.mrf.mxu0
    %v596 = vadd.f32 %v301, %v595
    %597 = vdwg.mxu0
    %598 = vmatpush.msra.mxu0 0.0
    %599 = vmatpush.msra.mxu0 0.0
    %600 = vmatpush.msra.mxu0 0.0
    %601 = vmatpush.msra.mxu0 0.0
    %602 = vmatpush.msra.mxu0 0.0
    %603 = vmatpush.msra.mxu0 0.0
    %604 = vmatpush.msra.mxu0 0.0
    %605 = vmatpush.msra.mxu0 0.0
    %606 = vmatpush.msra.mxu0 0.0
    %607 = vmatpush.msra.mxu0 0.0
    %608 = vmatpush.msra.mxu0 %v262
    %609 = vmatpush.msra.mxu0 %v230
    %610 = vmatpush.msra.mxu0 %v198
    %611 = vmatpush.msra.mxu0 %v166
    %612 = vmatpush.msra.mxu0 %v134
    %613 = vmatpush.msra.mxu0 %v102
    %614 = vmatmul.f32.gmra.mxu0 %v356
    %v615 = vpop.f32.mrf.mxu0
    %v616 = vadd.f32 %v302, %v615
    %617 = vdwg.mxu0
    %618 = vmatpush.msra.mxu0 0.0
    %619 = vmatpush.msra.mxu0 0.0
    %620 = vmatpush.msra.mxu0 0.0
    %621 = vmatpush.msra.mxu0 0.0
    %622 = vmatpush.msra.mxu0 0.0
    %623 = vmatpush.msra.mxu0 0.0
    %624 = vmatpush.msra.mxu0 0.0
    %625 = vmatpush.msra.mxu0 0.0
    %626 = vmatpush.msra.mxu0 0.0
    %627 = vmatpush.msra.mxu0 0.0
    %628 = vmatpush.msra.mxu0 %v263
    %629 = vmatpush.msra.mxu0 %v231
    %630 = vmatpush.msra.mxu0 %v199
    %631 = vmatpush.msra.mxu0 %v167
    %632 = vmatpush.msra.mxu0 %v135
    %633 = vmatpush.msra.mxu0 %v103
    %634 = vmatmul.f32.gmra.mxu0 %v356
    %v635 = vpop.f32.mrf.mxu0
    %v636 = vadd.f32 %v303, %v635
    %637 = vdwg.mxu0
    %638 = vmatpush.msra.mxu0 0.0
    %639 = vmatpush.msra.mxu0 0.0
    %640 = vmatpush.msra.mxu0 0.0
    %641 = vmatpush.msra.mxu0 0.0
    %642 = vmatpush.msra.mxu0 0.0
    %643 = vmatpush.msra.mxu0 0.0
    %644 = vmatpush.msra.mxu0 0.0
    %645 = vmatpush.msra.mxu0 0.0
    %646 = vmatpush.msra.mxu0 0.0
    %647 = vmatpush.msra.mxu0 0.0
    %648 = vmatpush.msra.mxu0 %v264
    %649 = vmatpush.msra.mxu0 %v232
    %650 = vmatpush.msra.mxu0 %v200
    %651 = vmatpush.msra.mxu0 %v168
    %652 = vmatpush.msra.mxu0 %v136
    %653 = vmatpush.msra.mxu0 %v104
    %654 = vmatmul.f32.gmra.mxu0 %v356
    %v655 = vpop.f32.mrf.mxu0
    %v656 = vadd.f32 %v304, %v655
    %657 = vdwg.mxu0
    %658 = vmatpush.msra.mxu0 0.0
    %659 = vmatpush.msra.mxu0 0.0
    %660 = vmatpush.msra.mxu0 0.0
    %661 = vmatpush.msra.mxu0 0.0
    %662 = vmatpush.msra.mxu0 0.0
    %663 = vmatpush.msra.mxu0 0.0
    %664 = vmatpush.msra.mxu0 0.0
    %665 = vmatpush.msra.mxu0 0.0
    %666 = vmatpush.msra.mxu0 0.0
    %667 = vmatpush.msra.mxu0 0.0
    %668 = vmatpush.msra.mxu0 %v265
    %669 = vmatpush.msra.mxu0 %v233
    %670 = vmatpush.msra.mxu0 %v201
    %671 = vmatpush.msra.mxu0 %v169
    %672 = vmatpush.msra.mxu0 %v137
    %673 = vmatpush.msra.mxu0 %v105
    %674 = vmatmul.f32.gmra.mxu0 %v356
    %v675 = vpop.f32.mrf.mxu0
    %v676 = vadd.f32 %v305, %v675
    %677 = vdwg.mxu0
    %678 = vmatpush.msra.mxu0 0.0
    %679 = vmatpush.msra.mxu0 0.0
    %680 = vmatpush.msra.mxu0 0.0
    %681 = vmatpush.msra.mxu0 0.0
    %682 = vmatpush.msra.mxu0 0.0
    %683 = vmatpush.msra.mxu0 0.0
    %684 = vmatpush.msra.mxu0 0.0
    %685 = vmatpush.msra.mxu0 0.0
    %686 = vmatpush.msra.mxu0 0.0
    %687 = vmatpush.msra.mxu0 0.0
    %688 = vmatpush.msra.mxu0 %v266
    %689 = vmatpush.msra.mxu0 %v234
    %690 = vmatpush.msra.mxu0 %v202
    %691 = vmatpush.msra.mxu0 %v170
    %692 = vmatpush.msra.mxu0 %v138
    %693 = vmatpush.msra.mxu0 %v106
    %694 = vmatmul.f32.gmra.mxu0 %v356
    %v695 = vpop.f32.mrf.mxu0
    %v696 = vadd.f32 %v306, %v695
    %697 = vdwg.mxu0
    %698 = vmatpush.msra.mxu0 0.0
    %699 = vmatpush.msra.mxu0 0.0
    %700 = vmatpush.msra.mxu0 0.0
    %701 = vmatpush.msra.mxu0 0.0
    %702 = vmatpush.msra.mxu0 0.0
    %703 = vmatpush.msra.mxu0 0.0
    %704 = vmatpush.msra.mxu0 0.0
    %705 = vmatpush.msra.mxu0 0.0
    %706 = vmatpush.msra.mxu0 0.0
    %707 = vmatpush.msra.mxu0 0.0
    %708 = vmatpush.msra.mxu0 %v267
    %709 = vmatpush.msra.mxu0 %v235
    %710 = vmatpush.msra.mxu0 %v203
    %711 = vmatpush.msra.mxu0 %v171
    %712 = vmatpush.msra.mxu0 %v139
    %713 = vmatpush.msra.mxu0 %v107
    %714 = vmatmul.f32.gmra.mxu0 %v356
    %v715 = vpop.f32.mrf.mxu0
    %v716 = vadd.f32 %v307, %v715
    %717 = vdwg.mxu0
    %718 = vmatpush.msra.mxu0 0.0
    %719 = vmatpush.msra.mxu0 0.0
    %720 = vmatpush.msra.mxu0 0.0
    %721 = vmatpush.msra.mxu0 0.0
    %722 = vmatpush.msra.mxu0 0.0
    %723 = vmatpush.msra.mxu0 0.0
    %724 = vmatpush.msra.mxu0 0.0
    %725 = vmatpush.msra.mxu0 0.0
    %726 = vmatpush.msra.mxu0 0.0
    %727 = vmatpush.msra.mxu0 0.0
    %728 = vmatpush.msra.mxu0 %v268
    %729 = vmatpush.msra.mxu0 %v236
    %730 = vmatpush.msra.mxu0 %v204
    %731 = vmatpush.msra.mxu0 %v172
    %732 = vmatpush.msra.mxu0 %v140
    %733 = vmatpush.msra.mxu0 %v108
    %734 = vmatmul.f32.gmra.mxu0 %v356
    %v735 = vpop.f32.mrf.mxu0
    %v736 = vadd.f32 %v308, %v735
    %737 = vdwg.mxu0
    %738 = vmatpush.msra.mxu0 0.0
    %739 = vmatpush.msra.mxu0 0.0
    %740 = vmatpush.msra.mxu0 0.0
    %741 = vmatpush.msra.mxu0 0.0
    %742 = vmatpush.msra.mxu0 0.0
    %743 = vmatpush.msra.mxu0 0.0
    %744 = vmatpush.msra.mxu0 0.0
    %745 = vmatpush.msra.mxu0 0.0
    %746 = vmatpush.msra.mxu0 0.0
    %747 = vmatpush.msra.mxu0 0.0
    %748 = vmatpush.msra.mxu0 %v269
    %749 = vmatpush.msra.mxu0 %v237
    %750 = vmatpush.msra.mxu0 %v205
    %751 = vmatpush.msra.mxu0 %v173
    %752 = vmatpush.msra.mxu0 %v141
    %753 = vmatpush.msra.mxu0 %v109
    %754 = vmatmul.f32.gmra.mxu0 %v356
    %v755 = vpop.f32.mrf.mxu0
    %v756 = vadd.f32 %v309, %v755
    %757 = vdwg.mxu0
    %758 = vmatpush.msra.mxu0 0.0
    %759 = vmatpush.msra.mxu0 0.0
    %760 = vmatpush.msra.mxu0 0.0
    %761 = vmatpush.msra.mxu0 0.0
    %762 = vmatpush.msra.mxu0 0.0
    %763 = vmatpush.msra.mxu0 0.0
    %764 = vmatpush.msra.mxu0 0.0
    %765 = vmatpush.msra.mxu0 0.0
    %766 = vmatpush.msra.mxu0 0.0
    %767 = vmatpush.msra.mxu0 0.0
    %768 = vmatpush.msra.mxu0 %v270
    %769 = vmatpush.msra.mxu0 %v238
    %770 = vmatpush.msra.mxu0 %v206
    %771 = vmatpush.msra.mxu0 %v174
    %772 = vmatpush.msra.mxu0 %v142
    %773 = vmatpush.msra.mxu0 %v110
    %774 = vmatmul.f32.gmra.mxu0 %v356
    %v775 = vpop.f32.mrf.mxu0
    %v776 = vadd.f32 %v310, %v775
    %777 = vdwg.mxu0
    %778 = vmatpush.msra.mxu0 0.0
    %779 = vmatpush.msra.mxu0 0.0
    %780 = vmatpush.msra.mxu0 0.0
    %781 = vmatpush.msra.mxu0 0.0
    %782 = vmatpush.msra.mxu0 0.0
    %783 = vmatpush.msra.mxu0 0.0
    %784 = vmatpush.msra.mxu0 0.0
    %785 = vmatpush.msra.mxu0 0.0
    %786 = vmatpush.msra.mxu0 0.0
    %787 = vmatpush.msra.mxu0 0.0
    %788 = vmatpush.msra.mxu0 %v271
    %789 = vmatpush.msra.mxu0 %v239
    %790 = vmatpush.msra.mxu0 %v207
    %791 = vmatpush.msra.mxu0 %v175
    %792 = vmatpush.msra.mxu0 %v143
    %793 = vmatpush.msra.mxu0 %v111
    %794 = vmatmul.f32.gmra.mxu0 %v356
    %v795 = vpop.f32.mrf.mxu0
    %v796 = vadd.f32 %v311, %v795
    %797 = vdwg.mxu0
    %798 = vmatpush.msra.mxu0 0.0
    %799 = vmatpush.msra.mxu0 0.0
    %800 = vmatpush.msra.mxu0 0.0
    %801 = vmatpush.msra.mxu0 0.0
    %802 = vmatpush.msra.mxu0 0.0
    %803 = vmatpush.msra.mxu0 0.0
    %804 = vmatpush.msra.mxu0 0.0
    %805 = vmatpush.msra.mxu0 0.0
    %806 = vmatpush.msra.mxu0 0.0
    %807 = vmatpush.msra.mxu0 0.0
    %808 = vmatpush.msra.mxu0 %v272
    %809 = vmatpush.msra.mxu0 %v240
    %810 = vmatpush.msra.mxu0 %v208
    %811 = vmatpush.msra.mxu0 %v176
    %812 = vmatpush.msra.mxu0 %v144
    %813 = vmatpush.msra.mxu0 %v112
    %814 = vmatmul.f32.gmra.mxu0 %v356
    %v815 = vpop.f32.mrf.mxu0
    %v816 = vadd.f32 %v312, %v815
    %817 = vdwg.mxu0
    %818 = vmatpush.msra.mxu0 0.0
    %819 = vmatpush.msra.mxu0 0.0
    %820 = vmatpush.msra.mxu0 0.0
    %821 = vmatpush.msra.mxu0 0.0
    %822 = vmatpush.msra.mxu0 0.0
    %823 = vmatpush.msra.mxu0 0.0
    %824 = vmatpush.msra.mxu0 0.0
    %825 = vmatpush.msra.mxu0 0.0
    %826 = vmatpush.msra.mxu0 0.0
    %827 = vmatpush.msra.mxu0 0.0
    %828 = vmatpush.msra.mxu0 %v273
    %829 = vmatpush.msra.mxu0 %v241
    %830 = vmatpush.msra.mxu0 %v209
    %831 = vmatpush.msra.mxu0 %v177
    %832 = vmatpush.msra.mxu0 %v145
    %833 = vmatpush.msra.mxu0 %v113
    %834 = vmatmul.f32.gmra.mxu0 %v356
    %v835 = vpop.f32.mrf.mxu0
    %v836 = vadd.f32 %v313, %v835
    %837 = vdwg.mxu0
    %838 = vmatpush.msra.mxu0 0.0
    %839 = vmatpush.msra.mxu0 0.0
    %840 = vmatpush.msra.mxu0 0.0
    %841 = vmatpush.msra.mxu0 0.0
    %842 = vmatpush.msra.mxu0 0.0
    %843 = vmatpush.msra.mxu0 0.0
    %844 = vmatpush.msra.mxu0 0.0
    %845 = vmatpush.msra.mxu0 0.0
    %846 = vmatpush.msra.mxu0 0.0
    %847 = vmatpush.msra.mxu0 0.0
    %848 = vmatpush.msra.mxu0 %v274
    %849 = vmatpush.msra.mxu0 %v242
    %850 = vmatpush.msra.mxu0 %v210
    %851 = vmatpush.msra.mxu0 %v178
    %852 = vmatpush.msra.mxu0 %v146
    %853 = vmatpush.msra.mxu0 %v114
    %854 = vmatmul.f32.gmra.mxu0 %v356
    %v855 = vpop.f32.mrf.mxu0
    %v856 = vadd.f32 %v314, %v855
    %857 = vdwg.mxu0
    %858 = vmatpush.msra.mxu0 0.0
    %859 = vmatpush.msra.mxu0 0.0
    %860 = vmatpush.msra.mxu0 0.0
    %861 = vmatpush.msra.mxu0 0.0
    %862 = vmatpush.msra.mxu0 0.0
    %863 = vmatpush.msra.mxu0 0.0
    %864 = vmatpush.msra.mxu0 0.0
    %865 = vmatpush.msra.mxu0 0.0
    %866 = vmatpush.msra.mxu0 0.0
    %867 = vmatpush.msra.mxu0 0.0
    %868 = vmatpush.msra.mxu0 %v275
    %869 = vmatpush.msra.mxu0 %v243
    %870 = vmatpush.msra.mxu0 %v211
    %871 = vmatpush.msra.mxu0 %v179
    %872 = vmatpush.msra.mxu0 %v147
    %873 = vmatpush.msra.mxu0 %v115
    %874 = vmatmul.f32.gmra.mxu0 %v356
    %v875 = vpop.f32.mrf.mxu0
    %v876 = vadd.f32 %v315, %v875
    %877 = vdwg.mxu0
    %878 = vmatpush.msra.mxu0 0.0
    %879 = vmatpush.msra.mxu0 0.0
    %880 = vmatpush.msra.mxu0 0.0
    %881 = vmatpush.msra.mxu0 0.0
    %882 = vmatpush.msra.mxu0 0.0
    %883 = vmatpush.msra.mxu0 0.0
    %884 = vmatpush.msra.mxu0 0.0
    %885 = vmatpush.msra.mxu0 0.0
    %886 = vmatpush.msra.mxu0 0.0
    %887 = vmatpush.msra.mxu0 0.0
    %888 = vmatpush.msra.mxu0 %v276
    %889 = vmatpush.msra.mxu0 %v244
    %890 = vmatpush.msra.mxu0 %v212
    %891 = vmatpush.msra.mxu0 %v180
    %892 = vmatpush.msra.mxu0 %v148
    %893 = vmatpush.msra.mxu0 %v116
    %894 = vmatmul.f32.gmra.mxu0 %v356
    %v895 = vpop.f32.mrf.mxu0
    %v896 = vadd.f32 %v316, %v895
    %897 = vdwg.mxu0
    %898 = vmatpush.msra.mxu0 0.0
    %899 = vmatpush.msra.mxu0 0.0
    %900 = vmatpush.msra.mxu0 0.0
    %901 = vmatpush.msra.mxu0 0.0
    %902 = vmatpush.msra.mxu0 0.0
    %903 = vmatpush.msra.mxu0 0.0
    %904 = vmatpush.msra.mxu0 0.0
    %905 = vmatpush.msra.mxu0 0.0
    %906 = vmatpush.msra.mxu0 0.0
    %907 = vmatpush.msra.mxu0 0.0
    %908 = vmatpush.msra.mxu0 %v277
    %909 = vmatpush.msra.mxu0 %v245
    %910 = vmatpush.msra.mxu0 %v213
    %911 = vmatpush.msra.mxu0 %v181
    %912 = vmatpush.msra.mxu0 %v149
    %913 = vmatpush.msra.mxu0 %v117
    %914 = vmatmul.f32.gmra.mxu0 %v356
    %v915 = vpop.f32.mrf.mxu0
    %v916 = vadd.f32 %v317, %v915
    %917 = vdwg.mxu0
    %918 = vmatpush.msra.mxu0 0.0
    %919 = vmatpush.msra.mxu0 0.0
    %920 = vmatpush.msra.mxu0 0.0
    %921 = vmatpush.msra.mxu0 0.0
    %922 = vmatpush.msra.mxu0 0.0
    %923 = vmatpush.msra.mxu0 0.0
    %924 = vmatpush.msra.mxu0 0.0
    %925 = vmatpush.msra.mxu0 0.0
    %926 = vmatpush.msra.mxu0 0.0
    %927 = vmatpush.msra.mxu0 0.0
    %928 = vmatpush.msra.mxu0 %v278
    %929 = vmatpush.msra.mxu0 %v246
    %930 = vmatpush.msra.mxu0 %v214
    %931 = vmatpush.msra.mxu0 %v182
    %932 = vmatpush.msra.mxu0 %v150
    %933 = vmatpush.msra.mxu0 %v118
    %934 = vmatmul.f32.gmra.mxu0 %v356
    %v935 = vpop.f32.mrf.mxu0
    %v936 = vadd.f32 %v318, %v935
    %937 = vdwg.mxu0
    %938 = vmatpush.msra.mxu0 0.0
    %939 = vmatpush.msra.mxu0 0.0
    %940 = vmatpush.msra.mxu0 0.0
    %941 = vmatpush.msra.mxu0 0.0
    %942 = vmatpush.msra.mxu0 0.0
    %943 = vmatpush.msra.mxu0 0.0
    %944 = vmatpush.msra.mxu0 0.0
    %945 = vmatpush.msra.mxu0 0.0
    %946 = vmatpush.msra.mxu0 0.0
    %947 = vmatpush.msra.mxu0 0.0
    %948 = vmatpush.msra.mxu0 %v279
    %949 = vmatpush.msra.mxu0 %v247
    %950 = vmatpush.msra.mxu0 %v215
    %951 = vmatpush.msra.mxu0 %v183
    %952 = vmatpush.msra.mxu0 %v151
    %953 = vmatpush.msra.mxu0 %v119
    %954 = vmatmul.f32.gmra.mxu0 %v356
    %v955 = vpop.f32.mrf.mxu0
    %v956 = vadd.f32 %v319, %v955
    %957 = vdwg.mxu0
    %958 = vmatpush.msra.mxu0 0.0
    %959 = vmatpush.msra.mxu0 0.0
    %960 = vmatpush.msra.mxu0 0.0
    %961 = vmatpush.msra.mxu0 0.0
    %962 = vmatpush.msra.mxu0 0.0
    %963 = vmatpush.msra.mxu0 0.0
    %964 = vmatpush.msra.mxu0 0.0
    %965 = vmatpush.msra.mxu0 0.0
    %966 = vmatpush.msra.mxu0 0.0
    %967 = vmatpush.msra.mxu0 0.0
    %968 = vmatpush.msra.mxu0 %v280
    %969 = vmatpush.msra.mxu0 %v248
    %970 = vmatpush.msra.mxu0 %v216
    %971 = vmatpush.msra.mxu0 %v184
    %972 = vmatpush.msra.mxu0 %v152
    %973 = vmatpush.msra.mxu0 %v120
    %974 = vmatmul.f32.gmra.mxu0 %v356
    %v975 = vpop.f32.mrf.mxu0
    %v976 = vadd.f32 %v320, %v975
    %977 = vdwg.mxu0
    %978 = vmatpush.msra.mxu0 0.0
    %979 = vmatpush.msra.mxu0 0.0
    %980 = vmatpush.msra.mxu0 0.0
    %981 = vmatpush.msra.mxu0 0.0
    %982 = vmatpush.msra.mxu0 0.0
    %983 = vmatpush.msra.mxu0 0.0
    %984 = vmatpush.msra.mxu0 0.0
    %985 = vmatpush.msra.mxu0 0.0
    %986 = vmatpush.msra.mxu0 0.0
    %987 = vmatpush.msra.mxu0 0.0
    %988 = vmatpush.msra.mxu0 %v281
    %989 = vmatpush.msra.mxu0 %v249
    %990 = vmatpush.msra.mxu0 %v217
    %991 = vmatpush.msra.mxu0 %v185
    %992 = vmatpush.msra.mxu0 %v153
    %993 = vmatpush.msra.mxu0 %v121
    %994 = vmatmul.f32.gmra.mxu0 %v356
    %v995 = vpop.f32.mrf.mxu0
    %v996 = vadd.f32 %v321, %v995
    %997 = vdwg.mxu0
    %v998 = vmul.f32 %v376, 0.2
    %v999 = vmul.f32 %v396, 0.2
    %v1000 = vmul.f32 %v416, 0.2
    %v1001 = vmul.f32 %v436, 0.2
    %v1002 = vmul.f32 %v456, 0.2
    %v1003 = vmul.f32 %v476, 0.2
    %v1004 = vmul.f32 %v496, 0.2
    %v1005 = vmul.f32 %v516, 0.2
    %v1006 = vmul.f32 %v536, 0.2
    %v1007 = vmul.f32 %v556, 0.2
    %v1008 = vmul.f32 %v576, 0.2
    %v1009 = vmul.f32 %v596, 0.2
    %v1010 = vmul.f32 %v616, 0.2
    %v1011 = vmul.f32 %v636, 0.2
    %v1012 = vmul.f32 %v656, 0.2
    %v1013 = vmul.f32 %v676, 0.2
    %v1014 = vmul.f32 %v696, 0.2
    %v1015 = vmul.f32 %v716, 0.2
    %v1016 = vmul.f32 %v736, 0.2
    %v1017 = vmul.f32 %v756, 0.2
    %v1018 = vmul.f32 %v776, 0.2
    %v1019 = vmul.f32 %v796, 0.2
    %v1020 = vmul.f32 %v816, 0.2
    %v1021 = vmul.f32 %v836, 0.2
    %v1022 = vmul.f32 %v856, 0.2
    %v1023 = vmul.f32 %v876, 0.2
    %v1024 = vmul.f32 %v896, 0.2
    %v1025 = vmul.f32 %v916, 0.2
    %v1026 = vmul.f32 %v936, 0.2
    %v1027 = vmul.f32 %v956, 0.2
    %v1028 = vmul.f32 %v976, 0.2
    %v1029 = vmul.f32 %v996, 0.2
    %v1030 = vmax.f32 %v376, %v998
    %v1031 = vmax.f32 %v396, %v999
    %v1032 = vmax.f32 %v416, %v1000
    %v1033 = vmax.f32 %v436, %v1001
    %v1034 = vmax.f32 %v456, %v1002
    %v1035 = vmax.f32 %v476, %v1003
    %v1036 = vmax.f32 %v496, %v1004
    %v1037 = vmax.f32 %v516, %v1005
    %v1038 = vmax.f32 %v536, %v1006
    %v1039 = vmax.f32 %v556, %v1007
    %v1040 = vmax.f32 %v576, %v1008
    %v1041 = vmax.f32 %v596, %v1009
    %v1042 = vmax.f32 %v616, %v1010
    %v1043 = vmax.f32 %v636, %v1011
    %v1044 = vmax.f32 %v656, %v1012
    %v1045 = vmax.f32 %v676, %v1013
    %v1046 = vmax.f32 %v696, %v1014
    %v1047 = vmax.f32 %v716, %v1015
    %v1048 = vmax.f32 %v736, %v1016
    %v1049 = vmax.f32 %v756, %v1017
    %v1050 = vmax.f32 %v776, %v1018
    %v1051 = vmax.f32 %v796, %v1019
    %v1052 = vmax.f32 %v816, %v1020
    %v1053 = vmax.f32 %v836, %v1021
    %v1054 = vmax.f32 %v856, %v1022
    %v1055 = vmax.f32 %v876, %v1023
    %v1056 = vmax.f32 %v896, %v1024
    %v1057 = vmax.f32 %v916, %v1025
    %v1058 = vmax.f32 %v936, %v1026
    %v1059 = vmax.f32 %v956, %v1027
    %v1060 = vmax.f32 %v976, %v1028
    %v1061 = vmax.f32 %v996, %v1029
    %v1062 = vld [vmem:[%s5] sm:$0xff]
    %v1063 = vld [vmem:[#allocation8] sm:$0xff]
    %v1064 = vld [vmem:[#allocation8 + $0x8] sm:$0xff]
    %v1065 = vld [vmem:[#allocation8 + $0x10] sm:$0xff]
    %v1066 = vld [vmem:[#allocation8 + $0x18] sm:$0xff]
    %v1071 = vperm.slane %v1063, 0
    %v1072 = vperm.slane %v1063, 1
    %v1073 = vperm.slane %v1063, 2
    %v1074 = vperm.slane %v1063, 3
    %v1075 = vperm.slane %v1063, 4
    %v1076 = vperm.slane %v1063, 5
    %v1077 = vperm.slane %v1063, 6
    %v1078 = vperm.slane %v1063, 7
    %v1079 = vperm.slane %v1064, 0
    %v1080 = vperm.slane %v1064, 1
    %v1081 = vperm.slane %v1064, 2
    %v1082 = vperm.slane %v1064, 3
    %v1083 = vperm.slane %v1064, 4
    %v1084 = vperm.slane %v1064, 5
    %v1085 = vperm.slane %v1064, 6
    %v1086 = vperm.slane %v1064, 7
    %v1087 = vperm.slane %v1065, 0
    %v1088 = vperm.slane %v1065, 1
    %v1089 = vperm.slane %v1065, 2
    %v1090 = vperm.slane %v1065, 3
    %v1091 = vperm.slane %v1065, 4
    %v1092 = vperm.slane %v1065, 5
    %v1093 = vperm.slane %v1065, 6
    %v1094 = vperm.slane %v1065, 7
    %v1095 = vperm.slane %v1066, 0
    %v1096 = vperm.slane %v1066, 1
    %v1097 = vperm.slane %v1066, 2
    %v1098 = vperm.slane %v1066, 3
    %v1099 = vperm.slane %v1066, 4
    %v1100 = vperm.slane %v1066, 5
    %v1101 = vperm.slane %v1066, 6
    %v1102 = vperm.slane %v1066, 7
    %v1135 = vmul.f32 %v1030, %v1071
    %v1136 = vmul.f32 %v1031, %v1072
    %v1137 = vmul.f32 %v1032, %v1073
    %v1138 = vmul.f32 %v1033, %v1074
    %v1139 = vmul.f32 %v1034, %v1075
    %v1140 = vmul.f32 %v1035, %v1076
    %v1141 = vmul.f32 %v1036, %v1077
    %v1142 = vmul.f32 %v1037, %v1078
    %v1143 = vmul.f32 %v1038, %v1079
    %v1144 = vmul.f32 %v1039, %v1080
    %v1145 = vmul.f32 %v1040, %v1081
    %v1146 = vmul.f32 %v1041, %v1082
    %v1147 = vmul.f32 %v1042, %v1083
    %v1148 = vmul.f32 %v1043, %v1084
    %v1149 = vmul.f32 %v1044, %v1085
    %v1150 = vmul.f32 %v1045, %v1086
    %v1151 = vmul.f32 %v1046, %v1087
    %v1152 = vmul.f32 %v1047, %v1088
    %v1153 = vmul.f32 %v1048, %v1089
    %v1154 = vmul.f32 %v1049, %v1090
    %v1155 = vmul.f32 %v1050, %v1091
    %v1156 = vmul.f32 %v1051, %v1092
    %v1157 = vmul.f32 %v1052, %v1093
    %v1158 = vmul.f32 %v1053, %v1094
    %v1159 = vmul.f32 %v1054, %v1095
    %v1160 = vmul.f32 %v1055, %v1096
    %v1161 = vmul.f32 %v1056, %v1097
    %v1162 = vmul.f32 %v1057, %v1098
    %v1163 = vmul.f32 %v1058, %v1099
    %v1164 = vmul.f32 %v1059, %v1100
    %v1165 = vmul.f32 %v1060, %v1101
    %v1166 = vmul.f32 %v1061, %v1102
    %v1167 = vadd.f32 %v1135, %v1136
    %v1168 = vadd.f32 %v1167, %v1137
    %v1169 = vadd.f32 %v1168, %v1138
    %v1170 = vadd.f32 %v1169, %v1139
    %v1171 = vadd.f32 %v1170, %v1140
    %v1172 = vadd.f32 %v1171, %v1141
    %v1173 = vadd.f32 %v1172, %v1142
    %v1174 = vadd.f32 %v1173, %v1143
    %v1175 = vadd.f32 %v1174, %v1144
    %v1176 = vadd.f32 %v1175, %v1145
    %v1177 = vadd.f32 %v1176, %v1146
    %v1178 = vadd.f32 %v1177, %v1147
    %v1179 = vadd.f32 %v1178, %v1148
    %v1180 = vadd.f32 %v1179, %v1149
    %v1181 = vadd.f32 %v1180, %v1150
    %v1182 = vadd.f32 %v1181, %v1151
    %v1183 = vadd.f32 %v1182, %v1152
    %v1184 = vadd.f32 %v1183, %v1153
    %v1185 = vadd.f32 %v1184, %v1154
    %v1186 = vadd.f32 %v1185, %v1155
    %v1187 = vadd.f32 %v1186, %v1156
    %v1188 = vadd.f32 %v1187, %v1157
    %v1189 = vadd.f32 %v1188, %v1158
    %v1190 = vadd.f32 %v1189, %v1159
    %v1191 = vadd.f32 %v1190, %v1160
    %v1192 = vadd.f32 %v1191, %v1161
    %v1193 = vadd.f32 %v1192, %v1162
    %v1194 = vadd.f32 %v1193, %v1163
    %v1195 = vadd.f32 %v1194, %v1164
    %v1196 = vadd.f32 %v1195, %v1165
    %v1197 = vadd.f32 %v1196, %v1166
    %1198 = vadd.xlane.f32.xlu0 %v1197
    %v1199 = vpop.xlane.xlu0 %1198
    %v1200 = vadd.f32 %v1062, %v1199
    %vm1201 = vcmask 7168
    %1202 = vst.msk [vmem:[%s5] sm:$0xff] %vm1201, %v1200
    // Predicated region
    $region42: #{tpu_custom_call.1} parent=1 // pred_check
      _
    $region43: #{tpu_custom_call.1} parent=1 // pred_check_branch
      %1204 = sbr.rel (0) target = $region45
    $region44: #{tpu_custom_call.1} parent=1 // pred_region
      _
    $region45: #{tpu_custom_call.1} parent=1 // pred_fallthru
      _
    // Predicated region
    $region46: #{tpu_custom_call.1} parent=1 // pred_check
      _
    $region47: #{tpu_custom_call.1} parent=1 // pred_check_branch
      %1206 = sbr.rel (0) target = $region49
    $region48: #{tpu_custom_call.1} parent=1 // pred_region
      _
    $region49: #{tpu_custom_call.1} parent=1 // pred_fallthru
      _
    %1207 = vsyncpa [#allocation4], 1
    %1208 = vsyncpa [#allocation6], 1
    %1209 = vsyncpa [#allocation9], 1

</llo_original>
